<compile_context>
chip_gen: v7x
topology: tpu7x:2x2x1
jax: 0.10.0
libtpu: 0.0.40
codegen_flags: <defaults>
</compile_context>

<pallas_src>
import functools

import jax
import jax.numpy as jnp
from jax.experimental import pallas as pl
from jax.experimental.pallas import tpu as pltpu

_MIB = 1024 * 1024


def _vmem_budgets():
    """Generation-aware (scoped_vmem_limit, block_budget, vmem_capacity) in bytes."""
    vmem_cap = None
    try:
        info = pltpu.get_tpu_info()
        vmem_cap = getattr(info, "vmem_capacity_bytes", None)
    except Exception:
        vmem_cap = None
    if vmem_cap is not None and vmem_cap <= 80 * _MIB:
        # v7x: 64 MiB per TensorCore.  Blocks >= ~1-4 MiB already sit on the
        # ~85% HBM-roofline plateau, so shrinking the budget costs nothing and
        # removes the VMEM-OOM / spill cliff.
        return 40 * _MIB, 14 * _MIB, vmem_cap
    # v5e / v6e: 128 MiB physical VMEM.  Keep the explicit override (v5e's
    # default scoped limit is only 16 MiB and would force small tiles).
    return 48 * _MIB, 24 * _MIB, vmem_cap


def _rmsnorm_kernel(x_ref, w_ref, o_ref, *, eps):
    # Hot path: lane-axis reduction + elementwise, all on the VPU/EUP.
    x = x_ref[...].astype(jnp.float32)                  # (tile_rows, hidden)
    var = jnp.mean(x * x, axis=-1, keepdims=True)       # (tile_rows, 1)
    inv = jax.lax.rsqrt(var + eps)
    normed = (x * inv).astype(x_ref.dtype)              # `.to(input_dtype)` step
    # weight * normed promotes exactly like torch (e.g. f32 weight * bf16 x);
    # final cast to o_ref.dtype is a no-op on the default (promoting) path.
    o_ref[...] = (w_ref[...] * normed).astype(o_ref.dtype)


def _pick_tile_rows(rows, hidden, in_dtype, out_dtype, block_budget_bytes):
    """Largest row tile whose double-buffered blocks + f32 temps fit the budget."""
    in_b = jnp.dtype(in_dtype).itemsize
    out_b = jnp.dtype(out_dtype).itemsize
    # Per-row footprint: double-buffered input block + double-buffered output
    # block + ~2 live f32 temporaries materialized inside the kernel body.
    bytes_per_row = hidden * (2 * in_b + 2 * out_b + 8)
    tile = block_budget_bytes // max(bytes_per_row, 1)
    # Round down to a sublane multiple (32 covers f32 / bf16 / int8 packing).
    tile = (tile // 32) * 32
    tile = max(tile, 8)
    # rows == full dim is always a legal block shape and avoids a tail block.
    return min(tile, rows) if rows > 0 else 8


def hymba_rms_norm(hidden_states, weight, eps=1e-6, *, tile_rows=None,
                   keep_input_dtype=False, core_parallel=None):
    """Pallas RMSNorm.  hidden_states: (..., hidden), weight: (hidden,).

    keep_input_dtype: opt-in fast path that keeps the output in the activation
      dtype (halves writeback traffic when weight is f32 and x is bf16).
      Default False matches torch's `weight * x` promotion exactly.
    core_parallel: force/disable CORE_PARALLEL grid sharding; None = auto
      (enabled only on dual-TensorCore v7x with a multi-block grid).
    """
    orig_shape = hidden_states.shape
    hidden = orig_shape[-1]
    x2d = hidden_states.reshape(-1, hidden)             # (rows, hidden)
    rows = x2d.shape[0]

    if keep_input_dtype:
        out_dtype = hidden_states.dtype
    else:
        out_dtype = jnp.promote_types(weight.dtype, hidden_states.dtype)

    vmem_limit, block_budget, vmem_cap = _vmem_budgets()

    if tile_rows is None:
        tile_rows = _pick_tile_rows(rows, hidden, hidden_states.dtype,
                                    out_dtype, block_budget)

    grid = (pl.cdiv(rows, tile_rows),)                   # tail block masked by Pallas

    if core_parallel is None:
        # Only v7x has 2 TensorCores per chip (and 64 MiB VMEM per TC).
        core_parallel = (vmem_cap is not None and vmem_cap <= 80 * _MIB
                         and grid[0] >= 2)
    dim_sem = (pltpu.CORE_PARALLEL,) if core_parallel else ("parallel",)

    w2d = weight.reshape(1, hidden)

    out = pl.pallas_call(
        functools.partial(_rmsnorm_kernel, eps=eps),
        out_shape=jax.ShapeDtypeStruct((rows, hidden), out_dtype),
        grid_spec=pltpu.PrefetchScalarGridSpec(
            num_scalar_prefetch=0,
            grid=grid,
            in_specs=[
                pl.BlockSpec((tile_rows, hidden), lambda i: (i, 0)),
                pl.BlockSpec((1, hidden), lambda i: (0, 0)),   # weight stays resident
            ],
            out_specs=pl.BlockSpec((tile_rows, hidden), lambda i: (i, 0)),
        ),
        compiler_params=pltpu.CompilerParams(
            dimension_semantics=dim_sem,
            vmem_limit_bytes=vmem_limit,
        ),
    )(x2d, w2d)

    return out.reshape(orig_shape[:-1] + (hidden,))


def _rmsnorm_ref(x, weight, eps=1e-6):
    x32 = x.astype(jnp.float32)
    var = jnp.mean(x32 * x32, axis=-1, keepdims=True)
    x32 = x32 * jax.lax.rsqrt(var + eps)
    return weight * x32.astype(x.dtype)


if __name__ == "__main__":
    key = jax.random.PRNGKey(0)
    k1, k2, k3 = jax.random.split(key, 3)

    # --- Test 1: basic path (f32 x, ones weight), single block. ---
    batch, seq, hidden = 2, 8, 32
    x = jax.random.normal(k1, (batch, seq, hidden), dtype=jnp.float32)
    weight = jnp.ones((hidden,), dtype=jnp.float32)     # nn.Parameter(torch.ones(...))
    out = jax.block_until_ready(hymba_rms_norm(x, weight, eps=1e-6))
    ref = _rmsnorm_ref(x, weight, eps=1e-6)
    assert out.shape == x.shape and out.dtype == x.dtype
    assert jnp.allclose(out, ref, atol=1e-5, rtol=1e-5)

    # --- Test 2: partial tail block (rows % tile_rows != 0), forced small tile. ---
    x2 = jax.random.normal(k2, (3, 7, hidden), dtype=jnp.float32)   # rows = 21
    out2 = jax.block_until_ready(hymba_rms_norm(x2, weight, eps=1e-6, tile_rows=8))
    ref2 = _rmsnorm_ref(x2, weight, eps=1e-6)
    assert out2.shape == x2.shape
    assert jnp.allclose(out2, ref2, atol=1e-5, rtol=1e-5)

    # --- Test 3: opt-in bf16-output fast path (f32 weight, bf16 activations). ---
    xb = jax.random.normal(k3, (batch, seq, hidden), dtype=jnp.float32).astype(jnp.bfloat16)
    wf = jnp.full((hidden,), 1.5, dtype=jnp.float32)
    out_bf = jax.block_until_ready(hymba_rms_norm(xb, wf, eps=1e-6, keep_input_dtype=True))
    assert out_bf.dtype == jnp.bfloat16
    ref_bf = _rmsnorm_ref(xb, wf, eps=1e-6).astype(jnp.bfloat16)
    assert jnp.allclose(out_bf.astype(jnp.float32), ref_bf.astype(jnp.float32),
                        atol=3e-2, rtol=3e-2)

    print("KERNEL_OK")
</pallas_src>

<mosaic_0001>
module attributes {stable_mosaic.version = 11 : i64} {
  func.func @_rmsnorm_kernel(%arg0: i32, %arg1: memref<16x32xf32, #tpu.memory_space<vmem>>, %arg2: memref<1x32xf32, #tpu.memory_space<vmem>>, %arg3: memref<16x32xf32, #tpu.memory_space<vmem>>) attributes {dimension_semantics = [#tpu.dimension_semantics<parallel>], iteration_bounds = array<i64: 1>, scalar_prefetch = 0 : i64, scratch_operands = 0 : i64, tpu.core_type = #tpu.core_type<tc>, window_params = [{transform_indices = @transform_0, window_bounds = array<i64: 16, 32>}, {pipeline_mode = #tpu.pipeline_mode<synchronous>, transform_indices = @transform_1, window_bounds = array<i64: 1, 32>}, {transform_indices = @transform_2, window_bounds = array<i64: 16, 32>}]} {
    %c0 = arith.constant 0 : index
    %c0_0 = arith.constant 0 : index
    %0 = vector.load %arg1[%c0, %c0_0] : memref<16x32xf32, #tpu.memory_space<vmem>>, vector<16x32xf32>
    %1 = arith.mulf %0, %0 : vector<16x32xf32>
    %cst = arith.constant dense<0.000000e+00> : vector<16xf32>
    %2 = vector.multi_reduction <add>, %1, %cst [1] : vector<16x32xf32> to vector<16xf32>
    %3 = vector.shape_cast %2 : vector<16xf32> to vector<16x1xf32>
    %cst_1 = arith.constant 3.200000e+01 : f32
    %4 = vector.broadcast %cst_1 : f32 to vector<16x1xf32>
    %5 = arith.divf %3, %4 : vector<16x1xf32>
    %cst_2 = arith.constant 9.99999997E-7 : f32
    %6 = vector.broadcast %cst_2 : f32 to vector<16x1xf32>
    %7 = arith.addf %5, %6 : vector<16x1xf32>
    %8 = math.rsqrt %7 : vector<16x1xf32>
    %9 = vector.broadcast %8 : vector<16x1xf32> to vector<16x32xf32>
    %10 = arith.mulf %0, %9 : vector<16x32xf32>
    %c0_3 = arith.constant 0 : index
    %c0_4 = arith.constant 0 : index
    %11 = vector.load %arg2[%c0_3, %c0_4] : memref<1x32xf32, #tpu.memory_space<vmem>>, vector<1x32xf32>
    %12 = vector.broadcast %11 : vector<1x32xf32> to vector<16x32xf32>
    %13 = arith.mulf %12, %10 : vector<16x32xf32>
    %c0_5 = arith.constant 0 : index
    %c0_6 = arith.constant 0 : index
    %14 = vector.load %arg3[%c0_5, %c0_6] : memref<16x32xf32, #tpu.memory_space<vmem>>, vector<16x32xf32>
    tpu.vector_store %arg3[%c0_5, %c0_6], %13 {strides = array<i32>} : memref<16x32xf32, #tpu.memory_space<vmem>>, vector<16x32xf32>,
    return
  }
  func.func @transform_0(%arg0: i32) -> (i32, i32) {
    %c0_i32 = arith.constant 0 : i32
    %c0_i32_0 = arith.constant 0 : i32
    return %arg0, %c0_i32 : i32, i32
  }
  func.func @transform_1(%arg0: i32) -> (i32, i32) {
    %c0_i32 = arith.constant 0 : i32
    %c0_i32_0 = arith.constant 0 : i32
    %c0_i32_1 = arith.constant 0 : i32
    return %c0_i32, %c0_i32_0 : i32, i32
  }
  func.func @transform_2(%arg0: i32) -> (i32, i32) {
    %c0_i32 = arith.constant 0 : i32
    %c0_i32_0 = arith.constant 0 : i32
    return %arg0, %c0_i32 : i32, i32
  }
}

</mosaic_0001>

<llo_original>
// kernel: tpu_custom_call.1
$region0: #{tpu_custom_call.1}
  #allocation0 [shape = 'u32[]', space=smem, size = 0x4, offset = 0x4, fixed_abs, tag = 'smem constant byte address 0x4 - core index']
  #allocation1 [shape = 'u32[144,128]{1,0:T(1,128)}', space=vmem, size = 0x12000, scoped, tag = 'internal scratch']
  %s0 = inlined_call_operand.hbm [shape: f32[16,32], index: 0, kind: input, shape index: {}]
  %s1 = inlined_call_operand.vmem [shape: f32[1,32], index: 1, kind: input, shape index: {}]
  %s2 = inlined_call_operand.hbm [shape: f32[16,32], index: 2, kind: output, shape index: {}]
  %s3 = sld [smem:[#allocation0]]
  $region22: #{tpu_custom_call.1} parent=0
    _
  %s5 = ssub.s32 1, %s3
  %s6 = scalar_select 0, %s5, %s3
  $region1: #{tpu_custom_call.1} parent=0
    #allocation2 [shape = 'u8[8192]{0}', space=vmem, size = 0x2000, scoped, tag = 'input window, operand 0, single buffered']
    #allocation3 [shape = 's32[1]{0}', space=sflag, size = 0x4, scoped, tag = 'scoped memory for tpu_custom_call.1']
    #allocation4 [shape = 's32[1]{0}', space=sflag, size = 0x4, scoped, tag = 'scoped memory for tpu_custom_call.1']
    #allocation5 [shape = 'u8[8192]{0}', space=vmem, size = 0x2000, scoped, tag = 'output window, operand 0, single buffered']
    %7 = vsyncpa [#allocation3], 0
    %8 = vsyncpa [#allocation4], 0
    // Predicated region
    $region2: #{tpu_custom_call.1} parent=1 // pred_check
      _
    $region3: #{tpu_custom_call.1} parent=1 // pred_check_branch
      %10 = sbr.rel (0) target = $region5
    $region4: #{tpu_custom_call.1} parent=1 // pred_region
      %s12 = ssub.s32 256, 256
      %13 = vsyncadd [#allocation3], %s12
      %s14 = sshll.u32 [#allocation2], 4
      %s15 = int_to_ptr.vmem [resolvable:$true] %s14
      %20 = dma.hbm_to_vmem [thread:$0]  %s0, 256, %s15, [#allocation3], 128, 128, 8
    $region5: #{tpu_custom_call.1} parent=1 // pred_fallthru
      _
    // Predicated region
    $region6: #{tpu_custom_call.1} parent=1 // pred_check
      _
    $region7: #{tpu_custom_call.1} parent=1 // pred_check_branch
      %22 = sbr.rel (0) target = $region9
    $region8: #{tpu_custom_call.1} parent=1 // pred_region
      _
    $region9: #{tpu_custom_call.1} parent=1 // pred_fallthru
      _
    // Predicated region
    $region10: #{tpu_custom_call.1} parent=1 // pred_check
      _
    $region11: #{tpu_custom_call.1} parent=1 // pred_check_branch
      %24 = sbr.rel (0) target = $region13
    $region12: #{tpu_custom_call.1} parent=1 // pred_region
      %25 = dma.done [#allocation3], 256
    $region13: #{tpu_custom_call.1} parent=1 // pred_fallthru
      _
    %v26 = vld [vmem:[#allocation2] sm:$0xff]
    %v27 = vld [vmem:[#allocation2 + $0x8] sm:$0xff]
    %v28 = vmul.f32 %v26, %v26
    %v29 = vmul.f32 %v27, %v27
    %vm30 = vcmask 261120
    %v31 = vsel %vm30, %v28, 0.0
    %32 = vadd.xlane.f32.xlu0 %v31
    %v33 = vpop.xlane.xlu0 %32
    %v34 = vsel %vm30, %v29, 0.0
    %35 = vadd.xlane.f32.xlu0 %v34
    %v36 = vpop.xlane.xlu0 %35
    %v37 = vrcp.pop 32.0
    %v38 = vmul.f32 %v33, %v37
    %v39 = vmul.f32 %v36, %v37
    %v40 = vadd.f32 %v38, 1e-06
    %v41 = vadd.f32 %v39, 1e-06
    %v42 = vrsqrt.pop %v40
    %v43 = vrsqrt.pop %v41
    %v44 = vmul.f32 %v26, %v42
    %v45 = vmul.f32 %v27, %v43
    %v46 = vld [vmem:[%s1] sm:$0x1]
    %v48 = vlaneseq
    %v49 = vshrl.u32 %v48, 7
    %v50 = vsub.s32 0, %v49
    %v51 = vrot.slane %v46, %v50
    %v53 = vmul.f32 %v51, %v44
    %v54 = vmul.f32 %v51, %v45
    %55 = vst.msk [vmem:[#allocation5] sm:$0xff] %vm30, %v53
    %56 = vst.msk [vmem:[#allocation5 + $0x8] sm:$0xff] %vm30, %v54
    // Predicated region
    $region14: #{tpu_custom_call.1} parent=1 // pred_check
      _
    $region15: #{tpu_custom_call.1} parent=1 // pred_check_branch
      %58 = sbr.rel (0) target = $region17
    $region16: #{tpu_custom_call.1} parent=1 // pred_region
      %s60 = ssub.s32 256, 256
      %61 = vsyncadd [#allocation4], %s60
      %s62 = sshll.u32 [#allocation5], 4
      %s63 = int_to_ptr.vmem [resolvable:$true] %s62
      %68 = dma.vmem_to_hbm [thread:$0]  %s63, 256, %s2, [#allocation4], 128, 128, 8
    $region17: #{tpu_custom_call.1} parent=1 // pred_fallthru
      _
    // Predicated region
    $region18: #{tpu_custom_call.1} parent=1 // pred_check
      _
    $region19: #{tpu_custom_call.1} parent=1 // pred_check_branch
      %70 = sbr.rel (0) target = $region21
    $region20: #{tpu_custom_call.1} parent=1 // pred_region
      %71 = dma.done [#allocation4], 256
    $region21: #{tpu_custom_call.1} parent=1 // pred_fallthru
      _
    %72 = vsyncpa [#allocation3], 1
    %73 = vsyncpa [#allocation4], 1

</llo_original>
